<compile_context>
chip_gen: v5e
topology: v5e:2x2
jax: 0.10.0
libtpu: 0.0.40
codegen_flags: <defaults>
</compile_context>

<pallas_src>
import jax
import jax.numpy as jnp
from jax.experimental import pallas as pl
from jax.experimental.pallas import tpu as pltpu


_LANE = 128   # vreg lane width
_SUB = 8      # vreg sublane count


def _const_fill_kernel(value_ref, o_ref):
    # value_ref: (1, 1) scalar in SMEM; o_ref: (tile_r, cols) VMEM block.
    # Single splat + store per vreg -- the store slot is the binding slot.
    o_ref[...] = jnp.full(o_ref.shape, value_ref[0, 0], dtype=o_ref.dtype)


def _choose_slab(total, itemsize):
    """Pick a lane/sublane-dense (rows, cols) slab and a row tile size."""
    # Lane width: as wide as useful, up to 2048 (= 16 * 128), multiple of 128.
    cols = _LANE
    while cols * 2 <= 2048 and cols * 2 * _SUB <= max(total, _LANE * _SUB):
        cols *= 2
    # Rows to cover all elements, padded to a sublane multiple.
    rows = pl.cdiv(total, cols)
    rows = pl.cdiv(rows, _SUB) * _SUB
    # Row tile: keep the double-buffered output tile <= ~8 MiB per buffer
    # (safe on v7x's 32 MiB scoped / 64 MiB physical VMEM, and v5e's 16 MiB
    # scoped default), and amortize the ~600-cycle per-grid-step overhead.
    tile_r_cap = max(_SUB, (8 * 1024 * 1024) // (cols * itemsize))
    tile_r_cap = (tile_r_cap // _SUB) * _SUB
    tile_r = max(_SUB, min(rows, tile_r_cap, 512))
    tile_r = (tile_r // _SUB) * _SUB
    # Pad rows so the grid divides evenly (padding is sliced off outside).
    rows = pl.cdiv(rows, tile_r) * tile_r
    return rows, cols, tile_r


def trivial_baseline(x, output_prob=True):
    """x: (N, C, H, W) array. Returns (N, 1, H, W): zeros (prob) or -10 (logits)."""
    N, _, H, W = x.shape
    dtype = x.dtype
    itemsize = jnp.dtype(dtype).itemsize
    total = N * H * W

    value = jnp.full((1, 1), 0.0 if output_prob else -10.0, dtype=dtype)

    rows, cols, tile_r = _choose_slab(total, itemsize)

    flat = pl.pallas_call(
        _const_fill_kernel,
        out_shape=jax.ShapeDtypeStruct((rows, cols), dtype),
        grid=(rows // tile_r,),
        in_specs=[pl.BlockSpec(memory_space=pltpu.MemorySpace.SMEM)],
        out_specs=pl.BlockSpec((tile_r, cols), lambda i: (i, 0)),
        compiler_params=pltpu.CompilerParams(
            dimension_semantics=("parallel",),        # megacore sharding on v7x
            vmem_limit_bytes=32 * 1024 * 1024,
        ),
        cost_estimate=pl.CostEstimate(
            flops=0,
            transcendentals=0,
            bytes_accessed=rows * cols * itemsize,
        ),
    )(value)

    # Drop padding and restore (N, 1, H, W).
    return flat.reshape(-1)[:total].reshape(N, 1, H, W)


def make_dummy_parameters(key):
    """Deterministic init of the unused nn.Conv2d(3, 1, 3, padding=1) params."""
    wkey, bkey = jax.random.split(key)
    fan_in = 3 * 3 * 3
    bound = 1.0 / jnp.sqrt(fan_in)
    weight = jax.random.uniform(wkey, (1, 3, 3, 3), jnp.float32, -bound, bound)
    bias = jax.random.uniform(bkey, (1,), jnp.float32, -bound, bound)
    return {"weight": weight, "bias": bias}


if __name__ == "__main__":
    key = jax.random.PRNGKey(0)
    pkey, xkey = jax.random.split(key)

    # Dummy (unused) conv parameters, mirroring the PyTorch module's __init__.
    _params = make_dummy_parameters(pkey)

    # Small input consistent with Conv2d(in_channels=3, ...): N=2, C=3, H=W=16.
    x = jax.random.normal(xkey, (2, 3, 16, 16), dtype=jnp.float32)

    y_prob = trivial_baseline(x, output_prob=True)
    y_logits = trivial_baseline(x, output_prob=False)
    jax.block_until_ready(y_prob)
    jax.block_until_ready(y_logits)

    assert y_prob.shape == (2, 1, 16, 16)
    assert y_logits.shape == (2, 1, 16, 16)
    assert y_prob.dtype == x.dtype and y_logits.dtype == x.dtype
    assert bool(jnp.all(y_prob == 0.0))
    assert bool(jnp.all(y_logits == -10.0))

    print("KERNEL_OK")
</pallas_src>

<mosaic_0001>
module attributes {stable_mosaic.version = 11 : i64} {
  func.func @_const_fill_kernel(%arg0: i32, %arg1: memref<1x1xf32, #tpu.memory_space<smem>>, %arg2: memref<8x128xf32, #tpu.memory_space<vmem>>) attributes {dimension_semantics = [#tpu.dimension_semantics<parallel>], iteration_bounds = array<i64: 1>, scalar_prefetch = 0 : i64, scratch_operands = 0 : i64, tpu.core_type = #tpu.core_type<tc>, window_params = [{transform_indices = @transform_0, window_bounds = array<i64: 1, 1>}, {transform_indices = @transform_1, window_bounds = array<i64: 8, 128>}]} {
    %c0 = arith.constant 0 : index
    %c0_0 = arith.constant 0 : index
    %0 = memref.load %arg1[%c0, %c0_0] : memref<1x1xf32, #tpu.memory_space<smem>>
    %1 = vector.broadcast %0 : f32 to vector<8x128xf32>
    %c0_1 = arith.constant 0 : index
    %c0_2 = arith.constant 0 : index
    %2 = vector.load %arg2[%c0_1, %c0_2] : memref<8x128xf32, #tpu.memory_space<vmem>>, vector<8x128xf32>
    tpu.vector_store %arg2[%c0_1, %c0_2], %1 {strides = array<i32>} : memref<8x128xf32, #tpu.memory_space<vmem>>, vector<8x128xf32>,
    return
  }
  func.func @transform_0(%arg0: i32) -> (i32, i32) {
    %c0_i32 = arith.constant 0 : i32
    %c0_i32_0 = arith.constant 0 : i32
    %c0_i32_1 = arith.constant 0 : i32
    return %c0_i32, %c0_i32_0 : i32, i32
  }
  func.func @transform_1(%arg0: i32) -> (i32, i32) {
    %c0_i32 = arith.constant 0 : i32
    %c0_i32_0 = arith.constant 0 : i32
    return %arg0, %c0_i32 : i32, i32
  }
}

</mosaic_0001>

<llo_original>
// kernel: tpu_custom_call.1
$region0: #{tpu_custom_call.1}
  #allocation0 [shape = 'u32[]', space=smem, size = 0x4, offset = 0x4, fixed_abs, tag = 'smem constant byte address 0x4 - core index']
  #allocation1 [shape = 'u32[72,128]{1,0:T(1,128)}', space=vmem, size = 0x9000, scoped, tag = 'internal scratch']
  #allocation2 [shape = 'f32[1,1]{1,0:T(1,128)S(6)}', space=smem, size = 0x200, scoped, tag = 'scoped memory for tpu_custom_call.1']
  %s0 = inlined_call_operand.<no memory space> [shape: f32[1,1], index: 0, kind: input, shape index: {}]
  %s1 = inlined_call_operand.hbm [shape: f32[8,128], index: 1, kind: output, shape index: {}]
  %s2 = sld [smem:[#allocation0]]
  $region14: #{tpu_custom_call.1} parent=0
    _
  %s4 = ssub.s32 1, %s2
  %s5 = scalar_select 0, %s4, %s2
  %6 = sst [smem:[#allocation2]] %s0
  $region1: #{tpu_custom_call.1} parent=0
    #allocation3 [shape = 'u8[4096]{0}', space=vmem, size = 0x1000, scoped, tag = 'output window, operand 0, single buffered']
    #allocation4 [shape = 's32[1]{0}', space=sflag, size = 0x4, scoped, tag = 'scoped memory for tpu_custom_call.1']
    %7 = vsyncpa [#allocation4], 0
    // Predicated region
    $region2: #{tpu_custom_call.1} parent=1 // pred_check
      _
    $region3: #{tpu_custom_call.1} parent=1 // pred_check_branch
      %9 = sbr.rel (0) target = $region5
    $region4: #{tpu_custom_call.1} parent=1 // pred_region
      _
    $region5: #{tpu_custom_call.1} parent=1 // pred_fallthru
      _
    %s10 = sld [smem:[#allocation2]]
    %v11 = vstv %s10
    %12 = vst [vmem:[#allocation3] sm:$0xff] %v11
    // Predicated region
    $region6: #{tpu_custom_call.1} parent=1 // pred_check
      _
    $region7: #{tpu_custom_call.1} parent=1 // pred_check_branch
      %14 = sbr.rel (0) target = $region9
    $region8: #{tpu_custom_call.1} parent=1 // pred_region
      %16 = vsyncadd [#allocation4], 0
      %s18 = sshll.u32 [#allocation3], 4
      %s19 = int_to_ptr.vmem [resolvable:$true] %s18
      %s20 = sshll.u32 %s1, 4
      %s21 = int_to_ptr.hbm [resolvable:$true] %s20
      %23 = dma.vmem_to_hbm [thread:$0]  %s19, 128, %s21, [#allocation4]
    $region9: #{tpu_custom_call.1} parent=1 // pred_fallthru
      _
    // Predicated region
    $region10: #{tpu_custom_call.1} parent=1 // pred_check
      _
    $region11: #{tpu_custom_call.1} parent=1 // pred_check_branch
      %25 = sbr.rel (0) target = $region13
    $region12: #{tpu_custom_call.1} parent=1 // pred_region
      %27 = dma.done [#allocation4], 128
    $region13: #{tpu_custom_call.1} parent=1 // pred_fallthru
      _
    %28 = vsyncpa [#allocation4], 1

</llo_original>
